<compile_context>
chip_gen: v7x
topology: tpu7x:2x2x1
jax: 0.10.0
libtpu: 0.0.40
codegen_flags: <defaults>
</compile_context>

<pallas_src>
import functools

import jax
import jax.numpy as jnp
from jax.experimental import pallas as pl
from jax.experimental.pallas import tpu as pltpu


def _critic_kernel(x_ref, w1_ref, b1_ref, w2_ref, b2_ref, out_ref):
    # x: (n_in, TB)   w1: (H, n_in)   b1: (H, 1)   w2: (1, H)   b2: (1, 1)
    # out: (1, TB)    -- everything lane-dense, batch on the lane axis.
    h = jnp.dot(w1_ref[...], x_ref[...],
                preferred_element_type=jnp.float32)            # (H, TB) f32
    h = jnp.maximum(h + b1_ref[...], 0.0)                      # bias/ReLU in f32
    q = jnp.dot(w2_ref[...], h.astype(w2_ref.dtype),
                preferred_element_type=jnp.float32)            # (1, TB) f32
    out_ref[...] = (q + b2_ref[...]).astype(out_ref.dtype)


@functools.partial(jax.jit, static_argnames=("tile_b", "compute_dtype"))
def critic_forward(state, action, params, *, tile_b=8192,
                   compute_dtype=jnp.float32):
    """state: (B, n_s), action: (B, n_a) -> q: (B, 1) float32."""
    w1 = params["w1"]          # (H, n_in)  -- PyTorch Linear layout
    b1 = params["b1"]          # (H, 1)
    w2 = params["w2"]          # (1, H)
    b2 = params["b2"]          # (1, 1)

    B, n_s = state.shape
    n_a = action.shape[1]
    H, n_in = w1.shape
    assert n_in == n_s + n_a

    # --- batch tiling ------------------------------------------------------
    b128 = ((B + 127) // 128) * 128                 # lane-aligned batch
    tb_cap = max(128, (int(tile_b) // 128) * 128)
    if b128 <= 128:
        tb = 128                                    # single tiny block
    else:
        # >= 2 grid steps so the "parallel" axis spans both v7x TensorCores,
        # capped at tile_b (VMEM per step is tiny in this layout).
        tb = min(tb_cap, max(128, ((b128 // 2) // 128) * 128))
    nb = pl.cdiv(b128, tb)
    b_pad = nb * tb

    # --- feature-major repack (transpose + concat + pad in one XLA pass) ---
    cdt = compute_dtype
    x_fm = jnp.concatenate([state.T.astype(cdt), action.T.astype(cdt)], axis=0)
    pad = b_pad - B
    if pad:
        x_fm = jnp.pad(x_fm, ((0, 0), (0, pad)))    # (n_in, b_pad)

    w1c = w1.astype(cdt)
    w2c = w2.astype(cdt)
    b1f = b1.astype(jnp.float32)
    b2f = b2.astype(jnp.float32)

    q_row = pl.pallas_call(
        _critic_kernel,
        out_shape=jax.ShapeDtypeStruct((1, b_pad), jnp.float32),
        grid=(nb,),
        in_specs=[
            pl.BlockSpec((n_in, tb), lambda i: (0, i)),   # x tile (lane-dense)
            pl.BlockSpec((H, n_in), lambda i: (0, 0)),    # W1 (VMEM-resident)
            pl.BlockSpec((H, 1), lambda i: (0, 0)),       # b1
            pl.BlockSpec((1, H), lambda i: (0, 0)),       # W2
            pl.BlockSpec((1, 1), lambda i: (0, 0)),       # b2
        ],
        out_specs=pl.BlockSpec((1, tb), lambda i: (0, i)),
        compiler_params=pltpu.CompilerParams(
            dimension_semantics=("parallel",),
            vmem_limit_bytes=32 * 1024 * 1024),
    )(x_fm, w1c, b1f, w2c, b2f)

    return q_row[0, :B].reshape(B, 1)


def init_critic_params(key, n_s, n_a, hidden=24):
    """PyTorch nn.Linear-style init and native (out, in) weight layout."""
    n_in = n_s + n_a
    k1, k2, k3, k4 = jax.random.split(key, 4)
    lim1 = 1.0 / jnp.sqrt(n_in)
    lim2 = 1.0 / jnp.sqrt(hidden)
    return {
        "w1": jax.random.uniform(k1, (hidden, n_in), jnp.float32, -lim1, lim1),
        "b1": jax.random.uniform(k2, (hidden, 1), jnp.float32, -lim1, lim1),
        "w2": jax.random.uniform(k3, (1, hidden), jnp.float32, -lim2, lim2),
        "b2": jax.random.uniform(k4, (1, 1), jnp.float32, -lim2, lim2),
    }


def _critic_ref(state, action, params):
    x = jnp.concatenate([state, action], axis=-1)                 # (B, n_in)
    h = jnp.maximum(x @ params["w1"].T + params["b1"].T, 0.0)     # (B, H)
    return h @ params["w2"].T + params["b2"]                      # (B, 1)


if __name__ == "__main__":
    key = jax.random.PRNGKey(0)
    k_param, k_s, k_a, k_s2, k_a2 = jax.random.split(key, 5)

    B, n_s, n_a = 8, 6, 2  # small SmartFarm-like sizes
    params = init_critic_params(k_param, n_s, n_a)

    state = jax.random.normal(k_s, (B, n_s), jnp.float32)
    action = jax.random.normal(k_a, (B, n_a), jnp.float32)

    q = jax.block_until_ready(critic_forward(state, action, params))
    q_ref = _critic_ref(state, action, params)
    assert q.shape == (B, 1), q.shape
    assert jnp.allclose(q, q_ref, atol=1e-3, rtol=1e-3), (q, q_ref)

    # Multi-step grid path (B padded to 384 -> 3 tiles of 128).
    B2 = 300
    state2 = jax.random.normal(k_s2, (B2, n_s), jnp.float32)
    action2 = jax.random.normal(k_a2, (B2, n_a), jnp.float32)
    q2 = jax.block_until_ready(critic_forward(state2, action2, params))
    q2_ref = _critic_ref(state2, action2, params)
    assert q2.shape == (B2, 1), q2.shape
    assert jnp.allclose(q2, q2_ref, atol=1e-3, rtol=1e-3), "tiled path mismatch"

    # Optional bf16 I/O path (f32 accumulation inside the kernel).
    q3 = jax.block_until_ready(
        critic_forward(state2, action2, params, compute_dtype=jnp.bfloat16))
    assert jnp.allclose(q3, q2_ref, atol=5e-2, rtol=5e-2), "bf16 path mismatch"

    print("KERNEL_OK")
</pallas_src>

<mosaic_0001>
module attributes {stable_mosaic.version = 11 : i64} {
  func.func @_critic_kernel(%arg0: i32, %arg1: memref<8x128xf32, #tpu.memory_space<vmem>>, %arg2: memref<24x8xf32, #tpu.memory_space<vmem>>, %arg3: memref<24x1xf32, #tpu.memory_space<vmem>>, %arg4: memref<1x24xf32, #tpu.memory_space<vmem>>, %arg5: memref<1x1xf32, #tpu.memory_space<vmem>>, %arg6: memref<1x128xf32, #tpu.memory_space<vmem>>) attributes {dimension_semantics = [#tpu.dimension_semantics<parallel>], iteration_bounds = array<i64: 1>, scalar_prefetch = 0 : i64, scratch_operands = 0 : i64, tpu.core_type = #tpu.core_type<tc>, window_params = [{transform_indices = @transform_0, window_bounds = array<i64: 8, 128>}, {pipeline_mode = #tpu.pipeline_mode<synchronous>, transform_indices = @transform_1, window_bounds = array<i64: 24, 8>}, {pipeline_mode = #tpu.pipeline_mode<synchronous>, transform_indices = @transform_2, window_bounds = array<i64: 24, 1>}, {pipeline_mode = #tpu.pipeline_mode<synchronous>, transform_indices = @transform_3, window_bounds = array<i64: 1, 24>}, {pipeline_mode = #tpu.pipeline_mode<synchronous>, transform_indices = @transform_4, window_bounds = array<i64: 1, 1>}, {transform_indices = @transform_5, window_bounds = array<i64: 1, 128>}]} {
    %c0 = arith.constant 0 : index
    %c0_0 = arith.constant 0 : index
    %0 = vector.load %arg2[%c0, %c0_0] : memref<24x8xf32, #tpu.memory_space<vmem>>, vector<24x8xf32>
    %c0_1 = arith.constant 0 : index
    %c0_2 = arith.constant 0 : index
    %1 = vector.load %arg1[%c0_1, %c0_2] : memref<8x128xf32, #tpu.memory_space<vmem>>, vector<8x128xf32>
    %cst = arith.constant dense<0.000000e+00> : vector<24x128xf32>
    %2 = tpu.matmul %0, %1, %cst {dimension_numbers = #tpu.dot_dimension_numbers<[1], [0], [0], [1], [0, 0, 1, 1], [], []>} : vector<24x8xf32>, vector<8x128xf32>, vector<24x128xf32> -> vector<24x128xf32>
    %c0_3 = arith.constant 0 : index
    %c0_4 = arith.constant 0 : index
    %3 = vector.load %arg3[%c0_3, %c0_4] : memref<24x1xf32, #tpu.memory_space<vmem>>, vector<24x1xf32>
    %4 = vector.broadcast %3 : vector<24x1xf32> to vector<24x128xf32>
    %5 = arith.addf %2, %4 : vector<24x128xf32>
    %cst_5 = arith.constant 0.000000e+00 : f32
    %6 = vector.broadcast %cst_5 : f32 to vector<24x128xf32>
    %7 = arith.maximumf %5, %6 : vector<24x128xf32>
    %c0_6 = arith.constant 0 : index
    %c0_7 = arith.constant 0 : index
    %8 = vector.load %arg4[%c0_6, %c0_7] : memref<1x24xf32, #tpu.memory_space<vmem>>, vector<1x24xf32>
    %cst_8 = arith.constant dense<0.000000e+00> : vector<1x128xf32>
    %9 = tpu.matmul %8, %7, %cst_8 {dimension_numbers = #tpu.dot_dimension_numbers<[1], [0], [0], [1], [0, 0, 1, 1], [], []>} : vector<1x24xf32>, vector<24x128xf32>, vector<1x128xf32> -> vector<1x128xf32>
    %c0_9 = arith.constant 0 : index
    %c0_10 = arith.constant 0 : index
    %10 = vector.load %arg5[%c0_9, %c0_10] : memref<1x1xf32, #tpu.memory_space<vmem>>, vector<1x1xf32>
    %11 = vector.broadcast %10 : vector<1x1xf32> to vector<1x128xf32>
    %12 = arith.addf %9, %11 : vector<1x128xf32>
    %c0_11 = arith.constant 0 : index
    %c0_12 = arith.constant 0 : index
    %13 = vector.load %arg6[%c0_11, %c0_12] : memref<1x128xf32, #tpu.memory_space<vmem>>, vector<1x128xf32>
    tpu.vector_store %arg6[%c0_11, %c0_12], %12 {strides = array<i32>} : memref<1x128xf32, #tpu.memory_space<vmem>>, vector<1x128xf32>,
    return
  }
  func.func @transform_0(%arg0: i32) -> (i32, i32) {
    %c0_i32 = arith.constant 0 : i32
    %c0_i32_0 = arith.constant 0 : i32
    return %c0_i32, %arg0 : i32, i32
  }
  func.func @transform_1(%arg0: i32) -> (i32, i32) {
    %c0_i32 = arith.constant 0 : i32
    %c0_i32_0 = arith.constant 0 : i32
    %c0_i32_1 = arith.constant 0 : i32
    return %c0_i32, %c0_i32_0 : i32, i32
  }
  func.func @transform_2(%arg0: i32) -> (i32, i32) {
    %c0_i32 = arith.constant 0 : i32
    %c0_i32_0 = arith.constant 0 : i32
    %c0_i32_1 = arith.constant 0 : i32
    return %c0_i32, %c0_i32_0 : i32, i32
  }
  func.func @transform_3(%arg0: i32) -> (i32, i32) {
    %c0_i32 = arith.constant 0 : i32
    %c0_i32_0 = arith.constant 0 : i32
    %c0_i32_1 = arith.constant 0 : i32
    return %c0_i32, %c0_i32_0 : i32, i32
  }
  func.func @transform_4(%arg0: i32) -> (i32, i32) {
    %c0_i32 = arith.constant 0 : i32
    %c0_i32_0 = arith.constant 0 : i32
    %c0_i32_1 = arith.constant 0 : i32
    return %c0_i32, %c0_i32_0 : i32, i32
  }
  func.func @transform_5(%arg0: i32) -> (i32, i32) {
    %c0_i32 = arith.constant 0 : i32
    %c0_i32_0 = arith.constant 0 : i32
    return %c0_i32, %arg0 : i32, i32
  }
}

</mosaic_0001>

<llo_original>
// kernel: critic_forward.1
$region0: #{critic_forward.1}
  #allocation0 [shape = 'u32[]', space=smem, size = 0x4, offset = 0x4, fixed_abs, tag = 'smem constant byte address 0x4 - core index']
  #allocation1 [shape = 'u32[144,128]{1,0:T(1,128)}', space=vmem, size = 0x12000, scoped, tag = 'internal scratch']
  #allocation2 [shape = 'f32[1,1]{1,0:T(1,128)S(1)}', space=vmem, size = 0x200, scoped, tag = 'scoped memory for critic_forward.1']
  %s0 = inlined_call_operand.vmem [shape: f32[8,128], index: 0, kind: input, shape index: {}]
  %s1 = inlined_call_operand.vmem [shape: f32[24,8], index: 1, kind: input, shape index: {}]
  %s2 = inlined_call_operand.vmem [shape: f32[24,1], index: 2, kind: input, shape index: {}]
  %s3 = inlined_call_operand.vmem [shape: f32[1,24], index: 3, kind: input, shape index: {}]
  %s4 = inlined_call_operand.<no memory space> [shape: f32[1,1], index: 4, kind: input, shape index: {}]
  %s5 = inlined_call_operand.vmem [shape: f32[1,128], index: 5, kind: output, shape index: {}]
  %s6 = sld [smem:[#allocation0]]
  $region30: #{critic_forward.1} parent=0
    _
  %s8 = ssub.s32 1, %s6
  %s9 = scalar_select 0, %s8, %s6
  %v10 = vstv %s4
  %11 = vst [vmem:[#allocation2] sm:$0x1] %v10
  // Predicated region
  $region2: #{critic_forward.1} parent=0 // pred_check
    _
  $region3: #{critic_forward.1} parent=0 // pred_check_branch
    %13 = sbr.rel (0) target = $region5
  $region4: #{critic_forward.1} parent=0 // pred_region
    _
  $region5: #{critic_forward.1} parent=0 // pred_fallthru
    _
  // Predicated region
  $region6: #{critic_forward.1} parent=0 // pred_check
    _
  $region7: #{critic_forward.1} parent=0 // pred_check_branch
    %15 = sbr.rel (0) target = $region9
  $region8: #{critic_forward.1} parent=0 // pred_region
    _
  $region9: #{critic_forward.1} parent=0 // pred_fallthru
    _
  // Predicated region
  $region10: #{critic_forward.1} parent=0 // pred_check
    _
  $region11: #{critic_forward.1} parent=0 // pred_check_branch
    %17 = sbr.rel (0) target = $region13
  $region12: #{critic_forward.1} parent=0 // pred_region
    _
  $region13: #{critic_forward.1} parent=0 // pred_fallthru
    _
  // Predicated region
  $region14: #{critic_forward.1} parent=0 // pred_check
    _
  $region15: #{critic_forward.1} parent=0 // pred_check_branch
    %19 = sbr.rel (0) target = $region17
  $region16: #{critic_forward.1} parent=0 // pred_region
    _
  $region17: #{critic_forward.1} parent=0 // pred_fallthru
    _
  // Predicated region
  $region18: #{critic_forward.1} parent=0 // pred_check
    _
  $region19: #{critic_forward.1} parent=0 // pred_check_branch
    %21 = sbr.rel (0) target = $region21
  $region20: #{critic_forward.1} parent=0 // pred_region
    _
  $region21: #{critic_forward.1} parent=0 // pred_fallthru
    _
  %v22 = vld [vmem:[%s1] sm:$0xff]
  %v23 = vld [vmem:[%s1 + $0x8] sm:$0xff]
  %v24 = vld [vmem:[%s1 + $0x10] sm:$0xff]
  %v25 = vld [vmem:[%s0] sm:$0xff]
  %v26 = vld [vmem:[%s2] sm:$0xff]
  %v27 = vld [vmem:[%s2 + $0x8] sm:$0xff]
  %v28 = vld [vmem:[%s2 + $0x10] sm:$0xff]
  %30 = vset.pattern.permute.xlu0 0
  %31 = vperm.xlu0 %30, %v26
  %v32 = vpop.permute.xlu0 %31
  %35 = vset.pattern.permute.xlu0 0
  %36 = vperm.xlu0 %35, %v27
  %v37 = vpop.permute.xlu0 %36
  %40 = vset.pattern.permute.xlu0 0
  %41 = vperm.xlu0 %40, %v28
  %v42 = vpop.permute.xlu0 %41
  %vm44 = vcmask 64512
  %v46 = vsel %vm44, %v22, 0
  %v49 = vsel %vm44, %v23, 0
  %v52 = vsel %vm44, %v24, 0
  %54 = vmatprep.subr.mxu0 0.0
  %55 = vmatpush1.msra.mxu0 %v25
  %56 = vmatprep.subr.mxu0 0.0
  %57 = vmatpush1.msra.mxu0 0.0
  %58 = vmatprep.subr.mxu0 0.0
  %59 = vmatpush1.msra.mxu0 0.0
  %60 = vmatprep.subr.mxu0 0.0
  %61 = vmatpush1.msra.mxu0 0.0
  %62 = vmatprep.subr.mxu0 0.0
  %63 = vmatpush1.msra.mxu0 0.0
  %64 = vmatprep.subr.mxu0 0.0
  %65 = vmatpush1.msra.mxu0 0.0
  %66 = vmatprep.subr.mxu0 0.0
  %67 = vmatpush1.msra.mxu0 0.0
  %68 = vmatprep.subr.mxu0 0.0
  %69 = vmatpush1.msra.mxu0 0.0
  %70 = vmatprep.subr.mxu0 0.0
  %71 = vmatpush1.msra.mxu0 0.0
  %72 = vmatprep.subr.mxu0 0.0
  %73 = vmatpush1.msra.mxu0 0.0
  %74 = vmatprep.subr.mxu0 0.0
  %75 = vmatpush1.msra.mxu0 0.0
  %76 = vmatprep.subr.mxu0 0.0
  %77 = vmatpush1.msra.mxu0 0.0
  %78 = vmatprep.subr.mxu0 0.0
  %79 = vmatpush1.msra.mxu0 0.0
  %80 = vmatprep.subr.mxu0 0.0
  %81 = vmatpush1.msra.mxu0 0.0
  %82 = vmatprep.subr.mxu0 0.0
  %83 = vmatpush1.msra.mxu0 0.0
  %84 = vmatprep.subr.mxu0 0.0
  %85 = vmatpush1.msra.mxu0 0.0
  %86 = vmatprep.subr.mxu0 0.0
  %87 = vmatpush1.msra.mxu0 0.0
  %88 = vmatprep.subr.mxu0 0.0
  %89 = vmatpush1.msra.mxu0 0.0
  %90 = vmatprep.subr.mxu0 0.0
  %91 = vmatpush1.msra.mxu0 0.0
  %92 = vmatprep.subr.mxu0 0.0
  %93 = vmatpush1.msra.mxu0 0.0
  %94 = vmatprep.subr.mxu0 0.0
  %95 = vmatpush1.msra.mxu0 0.0
  %96 = vmatprep.subr.mxu0 0.0
  %97 = vmatpush1.msra.mxu0 0.0
  %98 = vmatprep.subr.mxu0 0.0
  %99 = vmatpush1.msra.mxu0 0.0
  %100 = vmatprep.subr.mxu0 0.0
  %101 = vmatpush1.msra.mxu0 0.0
  %102 = vmatprep.subr.mxu0 0.0
  %103 = vmatpush1.msra.mxu0 0.0
  %104 = vmatprep.subr.mxu0 0.0
  %105 = vmatpush1.msra.mxu0 0.0
  %106 = vmatprep.subr.mxu0 0.0
  %107 = vmatpush1.msra.mxu0 0.0
  %108 = vmatprep.subr.mxu0 0.0
  %109 = vmatpush1.msra.mxu0 0.0
  %110 = vmatprep.subr.mxu0 0.0
  %111 = vmatpush1.msra.mxu0 0.0
  %112 = vmatprep.subr.mxu0 0.0
  %113 = vmatpush1.msra.mxu0 0.0
  %114 = vmatprep.subr.mxu0 0.0
  %115 = vmatpush1.msra.mxu0 0.0
  %116 = vmatprep.subr.mxu0 0.0
  %117 = vmatpush1.msra.mxu0 0.0
  %118 = vmatprep.mubr.f32.mxu0 0.0
  %119 = vmatmul.mubr.f32.gmra.mrb[0].mxu0 %v46
  %v120 = vpop.f32.mrb[0].mxu0
  %v121 = vadd.f32 %v32, %v120
  %v122 = vpop.f32.mrb[0].mxu0
  %123 = vmatprep.mubr.f32.mxu0 0.0
  %124 = vmatmul.mubr.f32.gmra.mrb[0].mxu0 %v49
  %v125 = vpop.f32.mrb[0].mxu0
  %v126 = vadd.f32 %v37, %v125
  %v127 = vpop.f32.mrb[0].mxu0
  %128 = vmatprep.mubr.f32.mxu0 0.0
  %129 = vmatmul.mubr.f32.gmra.mrb[0].mxu0 %v52
  %v130 = vpop.f32.mrb[0].mxu0
  %v131 = vadd.f32 %v42, %v130
  %v132 = vpop.f32.mrb[0].mxu0
  %133 = vdwg.mxu0
  %v134 = vmax.f32 %v121, 0.0
  %v135 = vmax.f32 %v126, 0.0
  %v136 = vmax.f32 %v131, 0.0
  %v137 = vld [vmem:[%s3] sm:$0x1]
  %v138 = vld [vmem:[#allocation2] sm:$0x1]
  %140 = vset.pattern.permute.xlu0 0
  %141 = vperm.xlu0 %140, %v138
  %v142 = vpop.permute.xlu0 %141
  %v144 = vlaneseq
  %v145 = vshrl.u32 %v144, 7
  %v146 = vsub.s32 0, %v145
  %v147 = vrot.slane %v142, %v146
  %vm148 = vcmask 195584
  %v150 = vsel %vm148, %v137, 0
  %152 = vmatprep.subr.mxu0 0.0
  %153 = vmatpush1.msra.mxu0 %v134
  %154 = vmatprep.subr.mxu0 0.0
  %155 = vmatpush1.msra.mxu0 %v135
  %156 = vmatprep.subr.mxu0 0.0
  %157 = vmatpush1.msra.mxu0 %v136
  %158 = vmatprep.subr.mxu0 0.0
  %159 = vmatpush1.msra.mxu0 0.0
  %160 = vmatprep.subr.mxu0 0.0
  %161 = vmatpush1.msra.mxu0 0.0
  %162 = vmatprep.subr.mxu0 0.0
  %163 = vmatpush1.msra.mxu0 0.0
  %164 = vmatprep.subr.mxu0 0.0
  %165 = vmatpush1.msra.mxu0 0.0
  %166 = vmatprep.subr.mxu0 0.0
  %167 = vmatpush1.msra.mxu0 0.0
  %168 = vmatprep.subr.mxu0 0.0
  %169 = vmatpush1.msra.mxu0 0.0
  %170 = vmatprep.subr.mxu0 0.0
  %171 = vmatpush1.msra.mxu0 0.0
  %172 = vmatprep.subr.mxu0 0.0
  %173 = vmatpush1.msra.mxu0 0.0
  %174 = vmatprep.subr.mxu0 0.0
  %175 = vmatpush1.msra.mxu0 0.0
  %176 = vmatprep.subr.mxu0 0.0
  %177 = vmatpush1.msra.mxu0 0.0
  %178 = vmatprep.subr.mxu0 0.0
  %179 = vmatpush1.msra.mxu0 0.0
  %180 = vmatprep.subr.mxu0 0.0
  %181 = vmatpush1.msra.mxu0 0.0
  %182 = vmatprep.subr.mxu0 0.0
  %183 = vmatpush1.msra.mxu0 0.0
  %184 = vmatprep.subr.mxu0 0.0
  %185 = vmatpush1.msra.mxu0 0.0
  %186 = vmatprep.subr.mxu0 0.0
  %187 = vmatpush1.msra.mxu0 0.0
  %188 = vmatprep.subr.mxu0 0.0
  %189 = vmatpush1.msra.mxu0 0.0
  %190 = vmatprep.subr.mxu0 0.0
  %191 = vmatpush1.msra.mxu0 0.0
  %192 = vmatprep.subr.mxu0 0.0
  %193 = vmatpush1.msra.mxu0 0.0
  %194 = vmatprep.subr.mxu0 0.0
  %195 = vmatpush1.msra.mxu0 0.0
  %196 = vmatprep.subr.mxu0 0.0
  %197 = vmatpush1.msra.mxu0 0.0
  %198 = vmatprep.subr.mxu0 0.0
  %199 = vmatpush1.msra.mxu0 0.0
  %200 = vmatprep.subr.mxu0 0.0
  %201 = vmatpush1.msra.mxu0 0.0
  %202 = vmatprep.subr.mxu0 0.0
  %203 = vmatpush1.msra.mxu0 0.0
  %204 = vmatprep.subr.mxu0 0.0
  %205 = vmatpush1.msra.mxu0 0.0
  %206 = vmatprep.subr.mxu0 0.0
  %207 = vmatpush1.msra.mxu0 0.0
  %208 = vmatprep.subr.mxu0 0.0
  %209 = vmatpush1.msra.mxu0 0.0
  %210 = vmatprep.subr.mxu0 0.0
  %211 = vmatpush1.msra.mxu0 0.0
  %212 = vmatprep.subr.mxu0 0.0
  %213 = vmatpush1.msra.mxu0 0.0
  %214 = vmatprep.subr.mxu0 0.0
  %215 = vmatpush1.msra.mxu0 0.0
  %216 = vmatprep.mubr.f32.mxu0 0.0
  %217 = vmatmul.mubr.f32.gmra.mrb[0].mxu0 %v150
  %v218 = vpop.f32.mrb[0].mxu0
  %v219 = vadd.f32 %v147, %v218
  %v220 = vpop.f32.mrb[0].mxu0
  %221 = vdwg.mxu0
  %222 = vst [vmem:[%s5] sm:$0x1] %v219
  // Predicated region
  $region22: #{critic_forward.1} parent=0 // pred_check
    _
  $region23: #{critic_forward.1} parent=0 // pred_check_branch
    %224 = sbr.rel (0) target = $region25
  $region24: #{critic_forward.1} parent=0 // pred_region
    _
  $region25: #{critic_forward.1} parent=0 // pred_fallthru
    _
  // Predicated region
  $region26: #{critic_forward.1} parent=0 // pred_check
    _
  $region27: #{critic_forward.1} parent=0 // pred_check_branch
    %226 = sbr.rel (0) target = $region29
  $region28: #{critic_forward.1} parent=0 // pred_region
    _
  $region29: #{critic_forward.1} parent=0 // pred_fallthru
    _

</llo_original>
